<compile_context>
chip_gen: v7x
topology: tpu7x:2x2x1
jax: 0.10.0
libtpu: 0.0.40
codegen_flags: <defaults>
</compile_context>

<pallas_src>
import numpy as np
import jax
import jax.numpy as jnp
from jax.experimental import pallas as pl
from jax.experimental.pallas import tpu as pltpu


def _round_up(x, m):
    return ((x + m - 1) // m) * m


# ----------------------------------------------------------------------------
# Kernel body: one (tm, D_pad) @ (D_pad, tn) MXU matmul + bias add per block.
# ----------------------------------------------------------------------------
def _proj_kernel(x_ref, w_ref, b_ref, o_ref):
    acc = jnp.dot(x_ref[...], w_ref[...], preferred_element_type=jnp.float32)
    o_ref[...] = (acc + b_ref[...]).astype(o_ref.dtype)


# ----------------------------------------------------------------------------
# Per-generation policy: (tile-sizing VMEM budget, scoped VMEM limit,
# number of parallel grid units to aim for).
# ----------------------------------------------------------------------------
_TM_CAP = 2048


def _tpu_config():
    vmem_cap = 64 << 20  # conservative default (v7x-sized)
    try:
        info = pltpu.get_tpu_info()
        vmem_cap = int(getattr(info, "vmem_capacity_bytes", vmem_cap))
    except Exception:
        pass
    if vmem_cap >= (100 << 20):
        # v5e / v6e: 128 MiB VMEM, single TensorCore -> big tiles, no forced split.
        return (64 << 20, 96 << 20, 1)
    # v7x-class: 64 MiB VMEM, two TensorCores -> keep >= 2 parallel grid units.
    return (24 << 20, 48 << 20, 2)


def _pick_tiles(m_rows, d_pad, c_pad, budget, target_units):
    """Pick (row tile tm, class tile tn, padded row count m_pad)."""
    m_eff = max(m_rows, 1)

    # --- class-dim tile tn ---------------------------------------------------
    if d_pad * c_pad * 2 <= budget // 2:          # whole weight fits single-buffered
        tn = c_pad
        nbuf_w = 1
    else:                                         # tile the class dimension
        tn = 128
        nbuf_w = 2
        for cand in (2048, 1024, 512, 256, 128):
            if cand <= c_pad and c_pad % cand == 0 and 2 * d_pad * cand * 2 <= budget // 2:
                tn = cand
                break
    n_col = c_pad // tn

    # --- row tile tm ----------------------------------------------------------
    fixed = nbuf_w * (d_pad * tn * 2 + tn * 4)            # weight (bf16) + bias (f32)
    per_row = 2 * d_pad * 2 + 2 * tn * 4                  # dbl-buffered x (bf16) + out (f32)
    tm_raw = max(16, (budget - fixed) // per_row)
    if tm_raw >= _TM_CAP:
        tm = _TM_CAP
    elif tm_raw >= 256:
        tm = (tm_raw // 256) * 256                        # whole MXU passes
    elif tm_raw >= 128:
        tm = 128
    else:
        tm = max(16, (tm_raw // 16) * 16)

    # Don't inflate tiny inputs to a huge tile.
    tm = min(tm, _round_up(m_eff, 128))

    # Keep >= target_units parallel grid units for multi-TC chips, but only when
    # the column axis doesn't already provide them and the input is big enough.
    if target_units > 1 and n_col == 1 and m_eff > 256:
        per_core = _round_up((m_eff + target_units - 1) // target_units, 128)
        tm = max(128, min(tm, per_core))

    m_pad = _round_up(m_eff, tm)
    return tm, tn, m_pad


def _proj_padded(x_p, w_p, b_p, *, tm, tn, vmem_limit):
    """x_p: [M_pad, D_pad] bf16, w_p: [D_pad, C_pad] bf16, b_p: [1, C_pad] f32."""
    m_pad, d_pad = x_p.shape
    c_pad = w_p.shape[1]
    n_row = m_pad // tm
    n_col = c_pad // tn

    cost = pl.CostEstimate(
        flops=2 * m_pad * d_pad * c_pad,
        transcendentals=0,
        bytes_accessed=(2 * m_pad * d_pad + 2 * d_pad * c_pad
                        + 4 * m_pad * c_pad + 4 * c_pad),
    )

    def build_and_run(single_buffer_resident):
        resident_kw = {}
        if single_buffer_resident and n_col == 1 and hasattr(pl, "Buffered"):
            # Constant index map -> double buffering buys nothing; halve footprint.
            resident_kw = dict(pipeline_mode=pl.Buffered(1))
        in_specs = [
            pl.BlockSpec((tm, d_pad), lambda j, i: (i, 0)),                   # row tile
            pl.BlockSpec((d_pad, tn), lambda j, i: (0, j), **resident_kw),    # weight cols
            pl.BlockSpec((1, tn), lambda j, i: (0, j), **resident_kw),        # bias cols
        ]
        out_spec = pl.BlockSpec((tm, tn), lambda j, i: (i, j))
        return pl.pallas_call(
            _proj_kernel,
            out_shape=jax.ShapeDtypeStruct((m_pad, c_pad), jnp.float32),
            grid_spec=pltpu.PrefetchScalarGridSpec(
                num_scalar_prefetch=0,
                # Column axis OUTER: each weight column tile is loaded once and
                # all row tiles stream against it (weight read exactly once).
                grid=(n_col, n_row),
                in_specs=in_specs,
                out_specs=out_spec,
            ),
            compiler_params=pltpu.CompilerParams(
                dimension_semantics=("parallel", "parallel"),
                vmem_limit_bytes=vmem_limit,
            ),
            cost_estimate=cost,
        )(x_p, w_p, b_p)

    try:
        return build_and_run(True)
    except Exception:
        # Fallback: default (double) buffering on the resident operands.
        return build_and_run(False)


# ----------------------------------------------------------------------------
# Public API
# ----------------------------------------------------------------------------
def prepare_inpainting_params(weight, bias):
    """Pad + cast the Linear parameters ONCE (hoisted out of the forward path).

    weight: [D, num_classes] float, bias: [num_classes] float.
    """
    d, c = weight.shape
    d_pad = _round_up(max(d, 1), 128)     # MXU contraction dim, lane-aligned
    c_pad = _round_up(max(c, 1), 128)     # lane-dense output stores
    w_p = jnp.zeros((d_pad, c_pad), jnp.bfloat16)
    w_p = w_p.at[:d, :c].set(weight.astype(jnp.bfloat16))
    b_p = jnp.zeros((1, c_pad), jnp.float32)
    b_p = b_p.at[0, :c].set(bias.astype(jnp.float32))
    return {"w_p": w_p, "b_p": b_p, "d": d, "num_classes": c}


def inpainting_head_forward(latent, mask, params, *, boot=False):
    """
    latent: [B, E, L, D] float32
    mask:   [B, E, L]    bool (concrete; ignored if boot=True)
    params: output of prepare_inpainting_params
    returns [num_masked, num_classes] f32 (or [B*E*L, num_classes] if boot)
    """
    b_, e_, l_, d = latent.shape
    w_p, b_p = params["w_p"], params["b_p"]
    c = params["num_classes"]
    d_pad, c_pad = w_p.shape

    budget, vmem_limit, target_units = _tpu_config()
    latent_flat = latent.reshape(b_ * e_ * l_, d)

    if boot:
        m = b_ * e_ * l_
        tm, tn, m_pad = _pick_tiles(m, d_pad, c_pad, budget, target_units)
        x_p = latent_flat.astype(jnp.bfloat16)
        if m_pad != m or d_pad != d:
            x_p = jnp.pad(x_p, ((0, m_pad - m), (0, d_pad - d)))
        out = _proj_padded(x_p, w_p, b_p, tm=tm, tn=tn, vmem_limit=vmem_limit)
        if m_pad != m or c_pad != c:
            out = out[:m, :c]
        return out

    # Boolean indexing has a dynamic output shape -> needs a concrete mask
    # (same restriction the PyTorch op has at trace/export time).
    # TODO(synk): an in-graph compaction (cumsum index build + scalar-prefetch
    # row gather) would avoid this host sync and keep the function jit-able.
    mask_np = np.asarray(mask).reshape(-1)
    idx = np.nonzero(mask_np)[0].astype(np.int32)
    m = int(idx.shape[0])

    tm, tn, m_pad = _pick_tiles(m, d_pad, c_pad, budget, target_units)

    # Pad the index vector (repeats of row 0) instead of materialising a
    # separate zero-padded activation copy; the bf16 cast fuses into the gather.
    idx_padded = np.zeros((m_pad,), np.int32)
    idx_padded[:m] = idx
    x_p = jnp.take(latent_flat, jnp.asarray(idx_padded), axis=0).astype(jnp.bfloat16)
    if d_pad != d:
        x_p = jnp.pad(x_p, ((0, 0), (0, d_pad - d)))

    out = _proj_padded(x_p, w_p, b_p, tm=tm, tn=tn, vmem_limit=vmem_limit)
    return out[:m, :c]


if __name__ == "__main__":
    # Small shapes consistent with the module's forward: latent [B, E, L, D].
    B, E, L, D, C = 2, 4, 8, 32, 16   # N = B*E*L = 64, num_classes = 16

    key = jax.random.PRNGKey(0)
    k_lat, k_w, k_b, k_m = jax.random.split(key, 4)

    latent = jax.random.normal(k_lat, (B, E, L, D), dtype=jnp.float32)

    # Deterministic nn.Linear-style init: U(-1/sqrt(D), 1/sqrt(D)).
    bound = 1.0 / np.sqrt(D)
    weight = jax.random.uniform(k_w, (D, C), dtype=jnp.float32,
                                minval=-bound, maxval=bound)
    bias = jax.random.uniform(k_b, (C,), dtype=jnp.float32,
                              minval=-bound, maxval=bound)

    # Pad/cast the parameters once (hoisted out of the per-call path).
    params = prepare_inpainting_params(weight, bias)

    # Inpainting mask over [B, E, L] (~25% masked), concrete for the gather.
    mask = np.asarray(jax.random.bernoulli(k_m, 0.25, (B, E, L)))
    num_masked = int(mask.sum())

    out = inpainting_head_forward(latent, mask, params, boot=False)
    out = jax.block_until_ready(out)

    # Reference in plain JAX (same bf16 input rounding, f32 accumulation).
    lat_q = latent.reshape(-1, D).astype(jnp.bfloat16).astype(jnp.float32)
    w_q = weight.astype(jnp.bfloat16).astype(jnp.float32)
    ref_dense = lat_q @ w_q + bias
    ref = ref_dense[np.nonzero(mask.reshape(-1))[0]]

    assert out.shape == (num_masked, C), (out.shape, (num_masked, C))
    np.testing.assert_allclose(np.asarray(out), np.asarray(ref),
                               rtol=1e-3, atol=1e-3)

    # Also exercise the boot=True path (projects all B*E*L rows).
    out_boot = inpainting_head_forward(latent, mask, params, boot=True)
    out_boot = jax.block_until_ready(out_boot)
    assert out_boot.shape == (B * E * L, C)
    np.testing.assert_allclose(np.asarray(out_boot), np.asarray(ref_dense),
                               rtol=1e-3, atol=1e-3)

    print("KERNEL_OK")
</pallas_src>

<mosaic_0001>
module attributes {stable_mosaic.version = 11 : i64} {
  func.func @_proj_kernel(%arg0: i32, %arg1: i32, %arg2: memref<128x128xbf16, #tpu.memory_space<vmem>>, %arg3: memref<128x128xbf16, #tpu.memory_space<vmem>>, %arg4: memref<1x128xf32, #tpu.memory_space<vmem>>, %arg5: memref<128x128xf32, #tpu.memory_space<vmem>>) attributes {dimension_semantics = [#tpu.dimension_semantics<parallel>, #tpu.dimension_semantics<parallel>], iteration_bounds = array<i64: 1, 1>, scalar_prefetch = 0 : i64, scratch_operands = 0 : i64, tpu.core_type = #tpu.core_type<tc>, window_params = [{transform_indices = @transform_0, window_bounds = array<i64: 128, 128>}, {pipeline_mode = #tpu.pipeline_mode<synchronous>, transform_indices = @transform_1, window_bounds = array<i64: 128, 128>}, {pipeline_mode = #tpu.pipeline_mode<synchronous>, transform_indices = @transform_2, window_bounds = array<i64: 1, 128>}, {transform_indices = @transform_3, window_bounds = array<i64: 128, 128>}]} {
    %c0 = arith.constant 0 : index
    %c0_0 = arith.constant 0 : index
    %0 = vector.load %arg2[%c0, %c0_0] : memref<128x128xbf16, #tpu.memory_space<vmem>>, vector<128x128xbf16>
    %c0_1 = arith.constant 0 : index
    %c0_2 = arith.constant 0 : index
    %1 = vector.load %arg3[%c0_1, %c0_2] : memref<128x128xbf16, #tpu.memory_space<vmem>>, vector<128x128xbf16>
    %cst = arith.constant dense<0.000000e+00> : vector<128x128xf32>
    %2 = tpu.matmul %0, %1, %cst {dimension_numbers = #tpu.dot_dimension_numbers<[1], [0], [0], [1], [0, 0, 1, 1], [], []>} : vector<128x128xbf16>, vector<128x128xbf16>, vector<128x128xf32> -> vector<128x128xf32>
    %c0_3 = arith.constant 0 : index
    %c0_4 = arith.constant 0 : index
    %3 = vector.load %arg4[%c0_3, %c0_4] : memref<1x128xf32, #tpu.memory_space<vmem>>, vector<1x128xf32>
    %4 = vector.broadcast %3 : vector<1x128xf32> to vector<128x128xf32>
    %5 = arith.addf %2, %4 : vector<128x128xf32>
    %c0_5 = arith.constant 0 : index
    %c0_6 = arith.constant 0 : index
    %6 = vector.load %arg5[%c0_5, %c0_6] : memref<128x128xf32, #tpu.memory_space<vmem>>, vector<128x128xf32>
    tpu.vector_store %arg5[%c0_5, %c0_6], %5 {strides = array<i32>} : memref<128x128xf32, #tpu.memory_space<vmem>>, vector<128x128xf32>,
    return
  }
  func.func @transform_0(%arg0: i32, %arg1: i32) -> (i32, i32) {
    %c0_i32 = arith.constant 0 : i32
    %c0_i32_0 = arith.constant 0 : i32
    return %arg1, %c0_i32 : i32, i32
  }
  func.func @transform_1(%arg0: i32, %arg1: i32) -> (i32, i32) {
    %c0_i32 = arith.constant 0 : i32
    %c0_i32_0 = arith.constant 0 : i32
    return %c0_i32, %arg0 : i32, i32
  }
  func.func @transform_2(%arg0: i32, %arg1: i32) -> (i32, i32) {
    %c0_i32 = arith.constant 0 : i32
    %c0_i32_0 = arith.constant 0 : i32
    return %c0_i32, %arg0 : i32, i32
  }
  func.func @transform_3(%arg0: i32, %arg1: i32) -> (i32, i32) {
    %c0_i32 = arith.constant 0 : i32
    return %arg1, %arg0 : i32, i32
  }
}

module attributes {stable_mosaic.version = 11 : i64} {
  func.func @_proj_kernel(%arg0: i32, %arg1: i32, %arg2: memref<128x128xbf16, #tpu.memory_space<vmem>>, %arg3: memref<128x128xbf16, #tpu.memory_space<vmem>>, %arg4: memref<1x128xf32, #tpu.memory_space<vmem>>, %arg5: memref<128x128xf32, #tpu.memory_space<vmem>>) attributes {dimension_semantics = [#tpu.dimension_semantics<parallel>, #tpu.dimension_semantics<parallel>], iteration_bounds = array<i64: 1, 1>, scalar_prefetch = 0 : i64, scratch_operands = 0 : i64, tpu.core_type = #tpu.core_type<tc>, window_params = [{transform_indices = @transform_0, window_bounds = array<i64: 128, 128>}, {transform_indices = @transform_1, window_bounds = array<i64: 128, 128>}, {transform_indices = @transform_2, window_bounds = array<i64: 1, 128>}, {transform_indices = @transform_3, window_bounds = array<i64: 128, 128>}]} {
    %c0 = arith.constant 0 : index
    %c0_0 = arith.constant 0 : index
    %0 = vector.load %arg2[%c0, %c0_0] : memref<128x128xbf16, #tpu.memory_space<vmem>>, vector<128x128xbf16>
    %c0_1 = arith.constant 0 : index
    %c0_2 = arith.constant 0 : index
    %1 = vector.load %arg3[%c0_1, %c0_2] : memref<128x128xbf16, #tpu.memory_space<vmem>>, vector<128x128xbf16>
    %cst = arith.constant dense<0.000000e+00> : vector<128x128xf32>
    %2 = tpu.matmul %0, %1, %cst {dimension_numbers = #tpu.dot_dimension_numbers<[1], [0], [0], [1], [0, 0, 1, 1], [], []>} : vector<128x128xbf16>, vector<128x128xbf16>, vector<128x128xf32> -> vector<128x128xf32>
    %c0_3 = arith.constant 0 : index
    %c0_4 = arith.constant 0 : index
    %3 = vector.load %arg4[%c0_3, %c0_4] : memref<1x128xf32, #tpu.memory_space<vmem>>, vector<1x128xf32>
    %4 = vector.broadcast %3 : vector<1x128xf32> to vector<128x128xf32>
    %5 = arith.addf %2, %4 : vector<128x128xf32>
    %c0_5 = arith.constant 0 : index
    %c0_6 = arith.constant 0 : index
    %6 = vector.load %arg5[%c0_5, %c0_6] : memref<128x128xf32, #tpu.memory_space<vmem>>, vector<128x128xf32>
    tpu.vector_store %arg5[%c0_5, %c0_6], %5 {strides = array<i32>} : memref<128x128xf32, #tpu.memory_space<vmem>>, vector<128x128xf32>,
    return
  }
  func.func @transform_0(%arg0: i32, %arg1: i32) -> (i32, i32) {
    %c0_i32 = arith.constant 0 : i32
    %c0_i32_0 = arith.constant 0 : i32
    return %arg1, %c0_i32 : i32, i32
  }
  func.func @transform_1(%arg0: i32, %arg1: i32) -> (i32, i32) {
    %c0_i32 = arith.constant 0 : i32
    %c0_i32_0 = arith.constant 0 : i32
    return %c0_i32, %arg0 : i32, i32
  }
  func.func @transform_2(%arg0: i32, %arg1: i32) -> (i32, i32) {
    %c0_i32 = arith.constant 0 : i32
    %c0_i32_0 = arith.constant 0 : i32
    return %c0_i32, %arg0 : i32, i32
  }
  func.func @transform_3(%arg0: i32, %arg1: i32) -> (i32, i32) {
    %c0_i32 = arith.constant 0 : i32
    return %arg1, %arg0 : i32, i32
  }
}

</mosaic_0001>

<llo_original>
// kernel: tpu_custom_call.1
$region0: #{tpu_custom_call.1}
  #allocation0 [shape = 'u32[]', space=smem, size = 0x4, offset = 0x4, fixed_abs, tag = 'smem constant byte address 0x4 - core index']
  #allocation1 [shape = 'u32[144,128]{1,0:T(1,128)}', space=vmem, size = 0x12000, scoped, tag = 'internal scratch']
  %s0 = inlined_call_operand.hbm [shape: bf16[128,128], index: 0, kind: input, shape index: {}]
  %s1 = inlined_call_operand.hbm [shape: bf16[128,128], index: 1, kind: input, shape index: {}]
  %s2 = inlined_call_operand.vmem [shape: f32[1,128], index: 2, kind: input, shape index: {}]
  %s3 = inlined_call_operand.hbm [shape: f32[128,128], index: 3, kind: output, shape index: {}]
  %s4 = sld [smem:[#allocation0]]
  $region30: #{tpu_custom_call.1} parent=0
    _
  %s6 = ssub.s32 1, %s4
  %s7 = scalar_select 0, %s6, %s4
  $region1: #{tpu_custom_call.1} parent=0
    #allocation2 [shape = 'u8[32768]{0}', space=vmem, size = 0x8000, scoped, tag = 'input window, operand 0, single buffered']
    #allocation3 [shape = 's32[1]{0}', space=sflag, size = 0x4, scoped, tag = 'scoped memory for tpu_custom_call.1']
    #allocation4 [shape = 's32[1]{0}', space=sflag, size = 0x4, scoped, tag = 'scoped memory for tpu_custom_call.1']
    #allocation5 [shape = 'u8[32768]{0}', space=vmem, size = 0x8000, scoped, tag = 'input window, operand 1, single buffered']
    #allocation6 [shape = 's32[1]{0}', space=sflag, size = 0x4, scoped, tag = 'scoped memory for tpu_custom_call.1']
    #allocation7 [shape = 'u8[65536]{0}', space=vmem, size = 0x10000, scoped, tag = 'output window, operand 0, single buffered']
    %8 = vsyncpa [#allocation3], 0
    %9 = vsyncpa [#allocation6], 0
    %10 = vsyncpa [#allocation4], 0
    // Predicated region
    $region2: #{tpu_custom_call.1} parent=1 // pred_check
      _
    $region3: #{tpu_custom_call.1} parent=1 // pred_check_branch
      %12 = sbr.rel (0) target = $region5
    $region4: #{tpu_custom_call.1} parent=1 // pred_region
      %s14 = ssub.s32 1024, 1024
      %15 = vsyncadd [#allocation3], %s14
      %s16 = sshll.u32 [#allocation2], 4
      %s17 = int_to_ptr.vmem [resolvable:$true] %s16
      %22 = dma.hbm_to_vmem [thread:$0]  %s0, 1024, %s17, [#allocation3], 64, 64, 4
    $region5: #{tpu_custom_call.1} parent=1 // pred_fallthru
      _
    // Predicated region
    $region6: #{tpu_custom_call.1} parent=1 // pred_check
      _
    $region7: #{tpu_custom_call.1} parent=1 // pred_check_branch
      %24 = sbr.rel (0) target = $region9
    $region8: #{tpu_custom_call.1} parent=1 // pred_region
      %s26 = ssub.s32 1024, 1024
      %27 = vsyncadd [#allocation6], %s26
      %s28 = sshll.u32 [#allocation5], 4
      %s29 = int_to_ptr.vmem [resolvable:$true] %s28
      %34 = dma.hbm_to_vmem [thread:$0]  %s1, 1024, %s29, [#allocation6], 64, 64, 4
    $region9: #{tpu_custom_call.1} parent=1 // pred_fallthru
      _
    // Predicated region
    $region10: #{tpu_custom_call.1} parent=1 // pred_check
      _
    $region11: #{tpu_custom_call.1} parent=1 // pred_check_branch
      %36 = sbr.rel (0) target = $region13
    $region12: #{tpu_custom_call.1} parent=1 // pred_region
      _
    $region13: #{tpu_custom_call.1} parent=1 // pred_fallthru
      _
    // Predicated region
    $region14: #{tpu_custom_call.1} parent=1 // pred_check
      _
    $region15: #{tpu_custom_call.1} parent=1 // pred_check_branch
      %38 = sbr.rel (0) target = $region17
    $region16: #{tpu_custom_call.1} parent=1 // pred_region
      %39 = dma.done [#allocation3], 1024
    $region17: #{tpu_custom_call.1} parent=1 // pred_fallthru
      _
    // Predicated region
    $region18: #{tpu_custom_call.1} parent=1 // pred_check
      _
    $region19: #{tpu_custom_call.1} parent=1 // pred_check_branch
      %41 = sbr.rel (0) target = $region21
    $region20: #{tpu_custom_call.1} parent=1 // pred_region
      %42 = dma.done [#allocation6], 1024
    $region21: #{tpu_custom_call.1} parent=1 // pred_fallthru
      _
    %v44 = vld [vmem:[#allocation2] sm:$0xf]
    %v45 = vld [vmem:[#allocation2 + $0x4] sm:$0xf]
    %v46 = vld [vmem:[#allocation2 + $0x8] sm:$0xf]
    %v47 = vld [vmem:[#allocation2 + $0xc] sm:$0xf]
    %v48 = vld [vmem:[#allocation2 + $0x10] sm:$0xf]
    %v49 = vld [vmem:[#allocation2 + $0x14] sm:$0xf]
    %v50 = vld [vmem:[#allocation2 + $0x18] sm:$0xf]
    %v51 = vld [vmem:[#allocation2 + $0x1c] sm:$0xf]
    %v52 = vld [vmem:[#allocation2 + $0x20] sm:$0xf]
    %v53 = vld [vmem:[#allocation2 + $0x24] sm:$0xf]
    %v54 = vld [vmem:[#allocation2 + $0x28] sm:$0xf]
    %v55 = vld [vmem:[#allocation2 + $0x2c] sm:$0xf]
    %v56 = vld [vmem:[#allocation2 + $0x30] sm:$0xf]
    %v57 = vld [vmem:[#allocation2 + $0x34] sm:$0xf]
    %v58 = vld [vmem:[#allocation2 + $0x38] sm:$0xf]
    %v59 = vld [vmem:[#allocation2 + $0x3c] sm:$0xf]
    %v60 = vld [vmem:[#allocation5] sm:$0xf]
    %v61 = vld [vmem:[#allocation5 + $0x4] sm:$0xf]
    %v62 = vld [vmem:[#allocation5 + $0x8] sm:$0xf]
    %v63 = vld [vmem:[#allocation5 + $0xc] sm:$0xf]
    %v64 = vld [vmem:[#allocation5 + $0x10] sm:$0xf]
    %v65 = vld [vmem:[#allocation5 + $0x14] sm:$0xf]
    %v66 = vld [vmem:[#allocation5 + $0x18] sm:$0xf]
    %v67 = vld [vmem:[#allocation5 + $0x1c] sm:$0xf]
    %v68 = vld [vmem:[#allocation5 + $0x20] sm:$0xf]
    %v69 = vld [vmem:[#allocation5 + $0x24] sm:$0xf]
    %v70 = vld [vmem:[#allocation5 + $0x28] sm:$0xf]
    %v71 = vld [vmem:[#allocation5 + $0x2c] sm:$0xf]
    %v72 = vld [vmem:[#allocation5 + $0x30] sm:$0xf]
    %v73 = vld [vmem:[#allocation5 + $0x34] sm:$0xf]
    %v74 = vld [vmem:[#allocation5 + $0x38] sm:$0xf]
    %v75 = vld [vmem:[#allocation5 + $0x3c] sm:$0xf]
    %v76 = vld [vmem:[%s2] sm:$0x1]
    %v78 = vlaneseq
    %v79 = vshrl.u32 %v78, 7
    %v80 = vsub.s32 0, %v79
    %v81 = vrot.slane %v76, %v80
    %v99 = vunpack.c.l.b16 %v44
    %v100 = vunpack.c.l.b16 %v45
    %v101 = vunpack.c.l.b16 %v46
    %v102 = vunpack.c.l.b16 %v47
    %v103 = vunpack.c.l.b16 %v48
    %v104 = vunpack.c.l.b16 %v49
    %v105 = vunpack.c.l.b16 %v50
    %v106 = vunpack.c.l.b16 %v51
    %v107 = vunpack.c.l.b16 %v52
    %v108 = vunpack.c.l.b16 %v53
    %v109 = vunpack.c.l.b16 %v54
    %v110 = vunpack.c.l.b16 %v55
    %v111 = vunpack.c.l.b16 %v56
    %v112 = vunpack.c.l.b16 %v57
    %v113 = vunpack.c.l.b16 %v58
    %v114 = vunpack.c.l.b16 %v59
    %v115 = vpack.c.b16 %v100, %v99
    %v116 = vpack.c.b16 %v102, %v101
    %v117 = vpack.c.b16 %v104, %v103
    %v118 = vpack.c.b16 %v106, %v105
    %v119 = vpack.c.b16 %v108, %v107
    %v120 = vpack.c.b16 %v110, %v109
    %v121 = vpack.c.b16 %v112, %v111
    %v122 = vpack.c.b16 %v114, %v113
    %v147 = vunpack.c.l.b16 %v60
    %v148 = vunpack.c.l.b16 %v61
    %v149 = vunpack.c.l.b16 %v62
    %v150 = vunpack.c.l.b16 %v63
    %v151 = vunpack.c.l.b16 %v64
    %v152 = vunpack.c.l.b16 %v65
    %v153 = vunpack.c.l.b16 %v66
    %v154 = vunpack.c.l.b16 %v67
    %v155 = vunpack.c.l.b16 %v68
    %v156 = vunpack.c.l.b16 %v69
    %v157 = vunpack.c.l.b16 %v70
    %v158 = vunpack.c.l.b16 %v71
    %v159 = vunpack.c.l.b16 %v72
    %v160 = vunpack.c.l.b16 %v73
    %v161 = vunpack.c.l.b16 %v74
    %v162 = vunpack.c.l.b16 %v75
    %v163 = vpack.c.b16 %v148, %v147
    %v164 = vpack.c.b16 %v150, %v149
    %v165 = vpack.c.b16 %v152, %v151
    %v166 = vpack.c.b16 %v154, %v153
    %v167 = vpack.c.b16 %v156, %v155
    %v168 = vpack.c.b16 %v158, %v157
    %v169 = vpack.c.b16 %v160, %v159
    %v170 = vpack.c.b16 %v162, %v161
    %179 = vmatprep.subr.bf16.mxu0 0
    %180 = vmatpush1.bf16.msra.mxu0 %v163
    %181 = vmatprep.subr.bf16.mxu0 0
    %182 = vmatpush1.bf16.msra.mxu0 %v164
    %183 = vmatprep.subr.bf16.mxu0 0
    %184 = vmatpush1.bf16.msra.mxu0 %v165
    %185 = vmatprep.subr.bf16.mxu0 0
    %186 = vmatpush1.bf16.msra.mxu0 %v166
    %187 = vmatprep.subr.bf16.mxu0 0
    %188 = vmatpush1.bf16.msra.mxu0 %v167
    %189 = vmatprep.subr.bf16.mxu0 0
    %190 = vmatpush1.bf16.msra.mxu0 %v168
    %191 = vmatprep.subr.bf16.mxu0 0
    %192 = vmatpush1.bf16.msra.mxu0 %v169
    %193 = vmatprep.subr.bf16.mxu0 0
    %194 = vmatpush1.bf16.msra.mxu0 %v170
    %195 = vmatprep.subr.bf16.mxu0 0
    %196 = vmatpush1.bf16.msra.mxu0 0
    %197 = vmatprep.subr.bf16.mxu0 0
    %198 = vmatpush1.bf16.msra.mxu0 0
    %199 = vmatprep.subr.bf16.mxu0 0
    %200 = vmatpush1.bf16.msra.mxu0 0
    %201 = vmatprep.subr.bf16.mxu0 0
    %202 = vmatpush1.bf16.msra.mxu0 0
    %203 = vmatprep.subr.bf16.mxu0 0
    %204 = vmatpush1.bf16.msra.mxu0 0
    %205 = vmatprep.subr.bf16.mxu0 0
    %206 = vmatpush1.bf16.msra.mxu0 0
    %207 = vmatprep.subr.bf16.mxu0 0
    %208 = vmatpush1.bf16.msra.mxu0 0
    %209 = vmatprep.subr.bf16.mxu0 0
    %210 = vmatpush1.bf16.msra.mxu0 0
    %211 = vmatprep.mubr.bf16.mxu0 0
    %212 = vmatmul.mubr.bf16.gmra.mrb[0].mxu0 %v115
    %v213 = vpop.f32.mrb[0].mxu0
    %v214 = vadd.f32 %v81, %v213
    %v215 = vpop.f32.mrb[0].mxu0
    %v216 = vpop.f32.mrb[0].mxu0
    %v217 = vadd.f32 %v81, %v216
    %v218 = vpop.f32.mrb[0].mxu0
    %219 = vmatprep.mubr.bf16.mxu0 0
    %220 = vmatmul.mubr.bf16.gmra.mrb[0].mxu0 %v116
    %v221 = vpop.f32.mrb[0].mxu0
    %v222 = vadd.f32 %v81, %v221
    %v223 = vpop.f32.mrb[0].mxu0
    %v224 = vpop.f32.mrb[0].mxu0
    %v225 = vadd.f32 %v81, %v224
    %v226 = vpop.f32.mrb[0].mxu0
    %227 = vmatprep.mubr.bf16.mxu0 0
    %228 = vmatmul.mubr.bf16.gmra.mrb[0].mxu0 %v117
    %v229 = vpop.f32.mrb[0].mxu0
    %v230 = vadd.f32 %v81, %v229
    %v231 = vpop.f32.mrb[0].mxu0
    %v232 = vpop.f32.mrb[0].mxu0
    %v233 = vadd.f32 %v81, %v232
    %v234 = vpop.f32.mrb[0].mxu0
    %235 = vmatprep.mubr.bf16.mxu0 0
    %236 = vmatmul.mubr.bf16.gmra.mrb[0].mxu0 %v118
    %v237 = vpop.f32.mrb[0].mxu0
    %v238 = vadd.f32 %v81, %v237
    %v239 = vpop.f32.mrb[0].mxu0
    %v240 = vpop.f32.mrb[0].mxu0
    %v241 = vadd.f32 %v81, %v240
    %v242 = vpop.f32.mrb[0].mxu0
    %243 = vmatprep.mubr.bf16.mxu0 0
    %244 = vmatmul.mubr.bf16.gmra.mrb[0].mxu0 %v119
    %v245 = vpop.f32.mrb[0].mxu0
    %v246 = vadd.f32 %v81, %v245
    %v247 = vpop.f32.mrb[0].mxu0
    %v248 = vpop.f32.mrb[0].mxu0
    %v249 = vadd.f32 %v81, %v248
    %v250 = vpop.f32.mrb[0].mxu0
    %251 = vmatprep.mubr.bf16.mxu0 0
    %252 = vmatmul.mubr.bf16.gmra.mrb[0].mxu0 %v120
    %v253 = vpop.f32.mrb[0].mxu0
    %v254 = vadd.f32 %v81, %v253
    %v255 = vpop.f32.mrb[0].mxu0
    %v256 = vpop.f32.mrb[0].mxu0
    %v257 = vadd.f32 %v81, %v256
    %v258 = vpop.f32.mrb[0].mxu0
    %259 = vmatprep.mubr.bf16.mxu0 0
    %260 = vmatmul.mubr.bf16.gmra.mrb[0].mxu0 %v121
    %v261 = vpop.f32.mrb[0].mxu0
    %v262 = vadd.f32 %v81, %v261
    %v263 = vpop.f32.mrb[0].mxu0
    %v264 = vpop.f32.mrb[0].mxu0
    %v265 = vadd.f32 %v81, %v264
    %v266 = vpop.f32.mrb[0].mxu0
    %267 = vmatprep.mubr.bf16.mxu0 0
    %268 = vmatmul.mubr.bf16.gmra.mrb[0].mxu0 %v122
    %v269 = vpop.f32.mrb[0].mxu0
    %v270 = vadd.f32 %v81, %v269
    %v271 = vpop.f32.mrb[0].mxu0
    %v272 = vpop.f32.mrb[0].mxu0
    %v273 = vadd.f32 %v81, %v272
    %v274 = vpop.f32.mrb[0].mxu0
    %275 = vdwg.mxu0
    %276 = vst [vmem:[#allocation7] sm:$0xff] %v214
    %277 = vst [vmem:[#allocation7 + $0x8] sm:$0xff] %v217
    %278 = vst [vmem:[#allocation7 + $0x10] sm:$0xff] %v222
    %279 = vst [vmem:[#allocation7 + $0x18] sm:$0xff] %v225
    %280 = vst [vmem:[#allocation7 + $0x20] sm:$0xff] %v230
    %281 = vst [vmem:[#allocation7 + $0x28] sm:$0xff] %v233
    %282 = vst [vmem:[#allocation7 + $0x30] sm:$0xff] %v238
    %283 = vst [vmem:[#allocation7 + $0x38] sm:$0xff] %v241
    %284 = vst [vmem:[#allocation7 + $0x40] sm:$0xff] %v246
    %285 = vst [vmem:[#allocation7 + $0x48] sm:$0xff] %v249
    %286 = vst [vmem:[#allocation7 + $0x50] sm:$0xff] %v254
    %287 = vst [vmem:[#allocation7 + $0x58] sm:$0xff] %v257
    %288 = vst [vmem:[#allocation7 + $0x60] sm:$0xff] %v262
    %289 = vst [vmem:[#allocation7 + $0x68] sm:$0xff] %v265
    %290 = vst [vmem:[#allocation7 + $0x70] sm:$0xff] %v270
    %291 = vst [vmem:[#allocation7 + $0x78] sm:$0xff] %v273
    // Predicated region
    $region22: #{tpu_custom_call.1} parent=1 // pred_check
      _
    $region23: #{tpu_custom_call.1} parent=1 // pred_check_branch
      %293 = sbr.rel (0) target = $region25
    $region24: #{tpu_custom_call.1} parent=1 // pred_region
      %s295 = ssub.s32 2048, 2048
      %296 = vsyncadd [#allocation4], %s295
      %s297 = sshll.u32 [#allocation7], 4
      %s298 = int_to_ptr.vmem [resolvable:$true] %s297
      %303 = dma.vmem_to_hbm [thread:$0]  %s298, 2048, %s3, [#allocation4], 128, 128, 8
    $region25: #{tpu_custom_call.1} parent=1 // pred_fallthru
      _
    // Predicated region
    $region26: #{tpu_custom_call.1} parent=1 // pred_check
      _
    $region27: #{tpu_custom_call.1} parent=1 // pred_check_branch
      %305 = sbr.rel (0) target = $region29
    $region28: #{tpu_custom_call.1} parent=1 // pred_region
      %306 = dma.done [#allocation4], 2048
    $region29: #{tpu_custom_call.1} parent=1 // pred_fallthru
      _
    %307 = vsyncpa [#allocation3], 1
    %308 = vsyncpa [#allocation6], 1
    %309 = vsyncpa [#allocation4], 1

// kernel: tpu_custom_call.1
$region0: #{tpu_custom_call.1}
  #allocation0 [shape = 'u32[]', space=smem, size = 0x4, offset = 0x4, fixed_abs, tag = 'smem constant byte address 0x4 - core index']
  #allocation1 [shape = 'u32[144,128]{1,0:T(1,128)}', space=vmem, size = 0x12000, scoped, tag = 'internal scratch']
  %s0 = inlined_call_operand.hbm [shape: bf16[128,128], index: 0, kind: input, shape index: {}]
  %s1 = inlined_call_operand.hbm [shape: bf16[128,128], index: 1, kind: input, shape index: {}]
  %s2 = inlined_call_operand.vmem [shape: f32[1,128], index: 2, kind: input, shape index: {}]
  %s3 = inlined_call_operand.hbm [shape: f32[128,128], index: 3, kind: output, shape index: {}]
  %s4 = sld [smem:[#allocation0]]
  $region30: #{tpu_custom_call.1} parent=0
    _
  %s6 = ssub.s32 1, %s4
  %s7 = scalar_select 0, %s6, %s4
  $region1: #{tpu_custom_call.1} parent=0
    #allocation2 [shape = 'u8[32768]{0}', space=vmem, size = 0x8000, scoped, tag = 'input window, operand 0, single buffered']
    #allocation3 [shape = 's32[1]{0}', space=sflag, size = 0x4, scoped, tag = 'scoped memory for tpu_custom_call.1']
    #allocation4 [shape = 's32[1]{0}', space=sflag, size = 0x4, scoped, tag = 'scoped memory for tpu_custom_call.1']
    #allocation5 [shape = 'u8[32768]{0}', space=vmem, size = 0x8000, scoped, tag = 'input window, operand 1, single buffered']
    #allocation6 [shape = 's32[1]{0}', space=sflag, size = 0x4, scoped, tag = 'scoped memory for tpu_custom_call.1']
    #allocation7 [shape = 'u8[65536]{0}', space=vmem, size = 0x10000, scoped, tag = 'output window, operand 0, single buffered']
    %8 = vsyncpa [#allocation3], 0
    %9 = vsyncpa [#allocation6], 0
    %10 = vsyncpa [#allocation4], 0
    // Predicated region
    $region2: #{tpu_custom_call.1} parent=1 // pred_check
      _
    $region3: #{tpu_custom_call.1} parent=1 // pred_check_branch
      %12 = sbr.rel (0) target = $region5
    $region4: #{tpu_custom_call.1} parent=1 // pred_region
      %s14 = ssub.s32 1024, 1024
      %15 = vsyncadd [#allocation3], %s14
      %s16 = sshll.u32 [#allocation2], 4
      %s17 = int_to_ptr.vmem [resolvable:$true] %s16
      %22 = dma.hbm_to_vmem [thread:$0]  %s0, 1024, %s17, [#allocation3], 64, 64, 4
    $region5: #{tpu_custom_call.1} parent=1 // pred_fallthru
      _
    // Predicated region
    $region6: #{tpu_custom_call.1} parent=1 // pred_check
      _
    $region7: #{tpu_custom_call.1} parent=1 // pred_check_branch
      %24 = sbr.rel (0) target = $region9
    $region8: #{tpu_custom_call.1} parent=1 // pred_region
      %s26 = ssub.s32 1024, 1024
      %27 = vsyncadd [#allocation6], %s26
      %s28 = sshll.u32 [#allocation5], 4
      %s29 = int_to_ptr.vmem [resolvable:$true] %s28
      %34 = dma.hbm_to_vmem [thread:$0]  %s1, 1024, %s29, [#allocation6], 64, 64, 4
    $region9: #{tpu_custom_call.1} parent=1 // pred_fallthru
      _
    // Predicated region
    $region10: #{tpu_custom_call.1} parent=1 // pred_check
      _
    $region11: #{tpu_custom_call.1} parent=1 // pred_check_branch
      %36 = sbr.rel (0) target = $region13
    $region12: #{tpu_custom_call.1} parent=1 // pred_region
      _
    $region13: #{tpu_custom_call.1} parent=1 // pred_fallthru
      _
    // Predicated region
    $region14: #{tpu_custom_call.1} parent=1 // pred_check
      _
    $region15: #{tpu_custom_call.1} parent=1 // pred_check_branch
      %38 = sbr.rel (0) target = $region17
    $region16: #{tpu_custom_call.1} parent=1 // pred_region
      %39 = dma.done [#allocation3], 1024
    $region17: #{tpu_custom_call.1} parent=1 // pred_fallthru
      _
    // Predicated region
    $region18: #{tpu_custom_call.1} parent=1 // pred_check
      _
    $region19: #{tpu_custom_call.1} parent=1 // pred_check_branch
      %41 = sbr.rel (0) target = $region21
    $region20: #{tpu_custom_call.1} parent=1 // pred_region
      %42 = dma.done [#allocation6], 1024
    $region21: #{tpu_custom_call.1} parent=1 // pred_fallthru
      _
    %v44 = vld [vmem:[#allocation2] sm:$0xf]
    %v45 = vld [vmem:[#allocation2 + $0x4] sm:$0xf]
    %v46 = vld [vmem:[#allocation2 + $0x8] sm:$0xf]
    %v47 = vld [vmem:[#allocation2 + $0xc] sm:$0xf]
    %v48 = vld [vmem:[#allocation2 + $0x10] sm:$0xf]
    %v49 = vld [vmem:[#allocation2 + $0x14] sm:$0xf]
    %v50 = vld [vmem:[#allocation2 + $0x18] sm:$0xf]
    %v51 = vld [vmem:[#allocation2 + $0x1c] sm:$0xf]
    %v52 = vld [vmem:[#allocation2 + $0x20] sm:$0xf]
    %v53 = vld [vmem:[#allocation2 + $0x24] sm:$0xf]
    %v54 = vld [vmem:[#allocation2 + $0x28] sm:$0xf]
    %v55 = vld [vmem:[#allocation2 + $0x2c] sm:$0xf]
    %v56 = vld [vmem:[#allocation2 + $0x30] sm:$0xf]
    %v57 = vld [vmem:[#allocation2 + $0x34] sm:$0xf]
    %v58 = vld [vmem:[#allocation2 + $0x38] sm:$0xf]
    %v59 = vld [vmem:[#allocation2 + $0x3c] sm:$0xf]
    %v60 = vld [vmem:[#allocation5] sm:$0xf]
    %v61 = vld [vmem:[#allocation5 + $0x4] sm:$0xf]
    %v62 = vld [vmem:[#allocation5 + $0x8] sm:$0xf]
    %v63 = vld [vmem:[#allocation5 + $0xc] sm:$0xf]
    %v64 = vld [vmem:[#allocation5 + $0x10] sm:$0xf]
    %v65 = vld [vmem:[#allocation5 + $0x14] sm:$0xf]
    %v66 = vld [vmem:[#allocation5 + $0x18] sm:$0xf]
    %v67 = vld [vmem:[#allocation5 + $0x1c] sm:$0xf]
    %v68 = vld [vmem:[#allocation5 + $0x20] sm:$0xf]
    %v69 = vld [vmem:[#allocation5 + $0x24] sm:$0xf]
    %v70 = vld [vmem:[#allocation5 + $0x28] sm:$0xf]
    %v71 = vld [vmem:[#allocation5 + $0x2c] sm:$0xf]
    %v72 = vld [vmem:[#allocation5 + $0x30] sm:$0xf]
    %v73 = vld [vmem:[#allocation5 + $0x34] sm:$0xf]
    %v74 = vld [vmem:[#allocation5 + $0x38] sm:$0xf]
    %v75 = vld [vmem:[#allocation5 + $0x3c] sm:$0xf]
    %v76 = vld [vmem:[%s2] sm:$0x1]
    %v78 = vlaneseq
    %v79 = vshrl.u32 %v78, 7
    %v80 = vsub.s32 0, %v79
    %v81 = vrot.slane %v76, %v80
    %v99 = vunpack.c.l.b16 %v44
    %v100 = vunpack.c.l.b16 %v45
    %v101 = vunpack.c.l.b16 %v46
    %v102 = vunpack.c.l.b16 %v47
    %v103 = vunpack.c.l.b16 %v48
    %v104 = vunpack.c.l.b16 %v49
    %v105 = vunpack.c.l.b16 %v50
    %v106 = vunpack.c.l.b16 %v51
    %v107 = vunpack.c.l.b16 %v52
    %v108 = vunpack.c.l.b16 %v53
    %v109 = vunpack.c.l.b16 %v54
    %v110 = vunpack.c.l.b16 %v55
    %v111 = vunpack.c.l.b16 %v56
    %v112 = vunpack.c.l.b16 %v57
    %v113 = vunpack.c.l.b16 %v58
    %v114 = vunpack.c.l.b16 %v59
    %v115 = vpack.c.b16 %v100, %v99
    %v116 = vpack.c.b16 %v102, %v101
    %v117 = vpack.c.b16 %v104, %v103
    %v118 = vpack.c.b16 %v106, %v105
    %v119 = vpack.c.b16 %v108, %v107
    %v120 = vpack.c.b16 %v110, %v109
    %v121 = vpack.c.b16 %v112, %v111
    %v122 = vpack.c.b16 %v114, %v113
    %v147 = vunpack.c.l.b16 %v60
    %v148 = vunpack.c.l.b16 %v61
    %v149 = vunpack.c.l.b16 %v62
    %v150 = vunpack.c.l.b16 %v63
    %v151 = vunpack.c.l.b16 %v64
    %v152 = vunpack.c.l.b16 %v65
    %v153 = vunpack.c.l.b16 %v66
    %v154 = vunpack.c.l.b16 %v67
    %v155 = vunpack.c.l.b16 %v68
    %v156 = vunpack.c.l.b16 %v69
    %v157 = vunpack.c.l.b16 %v70
    %v158 = vunpack.c.l.b16 %v71
    %v159 = vunpack.c.l.b16 %v72
    %v160 = vunpack.c.l.b16 %v73
    %v161 = vunpack.c.l.b16 %v74
    %v162 = vunpack.c.l.b16 %v75
    %v163 = vpack.c.b16 %v148, %v147
    %v164 = vpack.c.b16 %v150, %v149
    %v165 = vpack.c.b16 %v152, %v151
    %v166 = vpack.c.b16 %v154, %v153
    %v167 = vpack.c.b16 %v156, %v155
    %v168 = vpack.c.b16 %v158, %v157
    %v169 = vpack.c.b16 %v160, %v159
    %v170 = vpack.c.b16 %v162, %v161
    %179 = vmatprep.subr.bf16.mxu0 0
    %180 = vmatpush1.bf16.msra.mxu0 %v163
    %181 = vmatprep.subr.bf16.mxu0 0
    %182 = vmatpush1.bf16.msra.mxu0 %v164
    %183 = vmatprep.subr.bf16.mxu0 0
    %184 = vmatpush1.bf16.msra.mxu0 %v165
    %185 = vmatprep.subr.bf16.mxu0 0
    %186 = vmatpush1.bf16.msra.mxu0 %v166
    %187 = vmatprep.subr.bf16.mxu0 0
    %188 = vmatpush1.bf16.msra.mxu0 %v167
    %189 = vmatprep.subr.bf16.mxu0 0
    %190 = vmatpush1.bf16.msra.mxu0 %v168
    %191 = vmatprep.subr.bf16.mxu0 0
    %192 = vmatpush1.bf16.msra.mxu0 %v169
    %193 = vmatprep.subr.bf16.mxu0 0
    %194 = vmatpush1.bf16.msra.mxu0 %v170
    %195 = vmatprep.subr.bf16.mxu0 0
    %196 = vmatpush1.bf16.msra.mxu0 0
    %197 = vmatprep.subr.bf16.mxu0 0
    %198 = vmatpush1.bf16.msra.mxu0 0
    %199 = vmatprep.subr.bf16.mxu0 0
    %200 = vmatpush1.bf16.msra.mxu0 0
    %201 = vmatprep.subr.bf16.mxu0 0
    %202 = vmatpush1.bf16.msra.mxu0 0
    %203 = vmatprep.subr.bf16.mxu0 0
    %204 = vmatpush1.bf16.msra.mxu0 0
    %205 = vmatprep.subr.bf16.mxu0 0
    %206 = vmatpush1.bf16.msra.mxu0 0
    %207 = vmatprep.subr.bf16.mxu0 0
    %208 = vmatpush1.bf16.msra.mxu0 0
    %209 = vmatprep.subr.bf16.mxu0 0
    %210 = vmatpush1.bf16.msra.mxu0 0
    %211 = vmatprep.mubr.bf16.mxu0 0
    %212 = vmatmul.mubr.bf16.gmra.mrb[0].mxu0 %v115
    %v213 = vpop.f32.mrb[0].mxu0
    %v214 = vadd.f32 %v81, %v213
    %v215 = vpop.f32.mrb[0].mxu0
    %v216 = vpop.f32.mrb[0].mxu0
    %v217 = vadd.f32 %v81, %v216
    %v218 = vpop.f32.mrb[0].mxu0
    %219 = vmatprep.mubr.bf16.mxu0 0
    %220 = vmatmul.mubr.bf16.gmra.mrb[0].mxu0 %v116
    %v221 = vpop.f32.mrb[0].mxu0
    %v222 = vadd.f32 %v81, %v221
    %v223 = vpop.f32.mrb[0].mxu0
    %v224 = vpop.f32.mrb[0].mxu0
    %v225 = vadd.f32 %v81, %v224
    %v226 = vpop.f32.mrb[0].mxu0
    %227 = vmatprep.mubr.bf16.mxu0 0
    %228 = vmatmul.mubr.bf16.gmra.mrb[0].mxu0 %v117
    %v229 = vpop.f32.mrb[0].mxu0
    %v230 = vadd.f32 %v81, %v229
    %v231 = vpop.f32.mrb[0].mxu0
    %v232 = vpop.f32.mrb[0].mxu0
    %v233 = vadd.f32 %v81, %v232
    %v234 = vpop.f32.mrb[0].mxu0
    %235 = vmatprep.mubr.bf16.mxu0 0
    %236 = vmatmul.mubr.bf16.gmra.mrb[0].mxu0 %v118
    %v237 = vpop.f32.mrb[0].mxu0
    %v238 = vadd.f32 %v81, %v237
    %v239 = vpop.f32.mrb[0].mxu0
    %v240 = vpop.f32.mrb[0].mxu0
    %v241 = vadd.f32 %v81, %v240
    %v242 = vpop.f32.mrb[0].mxu0
    %243 = vmatprep.mubr.bf16.mxu0 0
    %244 = vmatmul.mubr.bf16.gmra.mrb[0].mxu0 %v119
    %v245 = vpop.f32.mrb[0].mxu0
    %v246 = vadd.f32 %v81, %v245
    %v247 = vpop.f32.mrb[0].mxu0
    %v248 = vpop.f32.mrb[0].mxu0
    %v249 = vadd.f32 %v81, %v248
    %v250 = vpop.f32.mrb[0].mxu0
    %251 = vmatprep.mubr.bf16.mxu0 0
    %252 = vmatmul.mubr.bf16.gmra.mrb[0].mxu0 %v120
    %v253 = vpop.f32.mrb[0].mxu0
    %v254 = vadd.f32 %v81, %v253
    %v255 = vpop.f32.mrb[0].mxu0
    %v256 = vpop.f32.mrb[0].mxu0
    %v257 = vadd.f32 %v81, %v256
    %v258 = vpop.f32.mrb[0].mxu0
    %259 = vmatprep.mubr.bf16.mxu0 0
    %260 = vmatmul.mubr.bf16.gmra.mrb[0].mxu0 %v121
    %v261 = vpop.f32.mrb[0].mxu0
    %v262 = vadd.f32 %v81, %v261
    %v263 = vpop.f32.mrb[0].mxu0
    %v264 = vpop.f32.mrb[0].mxu0
    %v265 = vadd.f32 %v81, %v264
    %v266 = vpop.f32.mrb[0].mxu0
    %267 = vmatprep.mubr.bf16.mxu0 0
    %268 = vmatmul.mubr.bf16.gmra.mrb[0].mxu0 %v122
    %v269 = vpop.f32.mrb[0].mxu0
    %v270 = vadd.f32 %v81, %v269
    %v271 = vpop.f32.mrb[0].mxu0
    %v272 = vpop.f32.mrb[0].mxu0
    %v273 = vadd.f32 %v81, %v272
    %v274 = vpop.f32.mrb[0].mxu0
    %275 = vdwg.mxu0
    %276 = vst [vmem:[#allocation7] sm:$0xff] %v214
    %277 = vst [vmem:[#allocation7 + $0x8] sm:$0xff] %v217
    %278 = vst [vmem:[#allocation7 + $0x10] sm:$0xff] %v222
    %279 = vst [vmem:[#allocation7 + $0x18] sm:$0xff] %v225
    %280 = vst [vmem:[#allocation7 + $0x20] sm:$0xff] %v230
    %281 = vst [vmem:[#allocation7 + $0x28] sm:$0xff] %v233
    %282 = vst [vmem:[#allocation7 + $0x30] sm:$0xff] %v238
    %283 = vst [vmem:[#allocation7 + $0x38] sm:$0xff] %v241
    %284 = vst [vmem:[#allocation7 + $0x40] sm:$0xff] %v246
    %285 = vst [vmem:[#allocation7 + $0x48] sm:$0xff] %v249
    %286 = vst [vmem:[#allocation7 + $0x50] sm:$0xff] %v254
    %287 = vst [vmem:[#allocation7 + $0x58] sm:$0xff] %v257
    %288 = vst [vmem:[#allocation7 + $0x60] sm:$0xff] %v262
    %289 = vst [vmem:[#allocation7 + $0x68] sm:$0xff] %v265
    %290 = vst [vmem:[#allocation7 + $0x70] sm:$0xff] %v270
    %291 = vst [vmem:[#allocation7 + $0x78] sm:$0xff] %v273
    // Predicated region
    $region22: #{tpu_custom_call.1} parent=1 // pred_check
      _
    $region23: #{tpu_custom_call.1} parent=1 // pred_check_branch
      %293 = sbr.rel (0) target = $region25
    $region24: #{tpu_custom_call.1} parent=1 // pred_region
      %s295 = ssub.s32 2048, 2048
      %296 = vsyncadd [#allocation4], %s295
      %s297 = sshll.u32 [#allocation7], 4
      %s298 = int_to_ptr.vmem [resolvable:$true] %s297
      %303 = dma.vmem_to_hbm [thread:$0]  %s298, 2048, %s3, [#allocation4], 128, 128, 8
    $region25: #{tpu_custom_call.1} parent=1 // pred_fallthru
      _
    // Predicated region
    $region26: #{tpu_custom_call.1} parent=1 // pred_check
      _
    $region27: #{tpu_custom_call.1} parent=1 // pred_check_branch
      %305 = sbr.rel (0) target = $region29
    $region28: #{tpu_custom_call.1} parent=1 // pred_region
      %306 = dma.done [#allocation4], 2048
    $region29: #{tpu_custom_call.1} parent=1 // pred_fallthru
      _
    %307 = vsyncpa [#allocation3], 1
    %308 = vsyncpa [#allocation6], 1
    %309 = vsyncpa [#allocation4], 1

</llo_original>
